<compile_context>
chip_gen: v5e
topology: v5e:2x2
jax: 0.10.0
libtpu: 0.0.40
codegen_flags: <defaults>
</compile_context>

<pallas_src>
import jax
import jax.numpy as jnp
from jax.experimental import pallas as pl
from jax.experimental.pallas import tpu as pltpu


def _round_up(x, m):
    return (x + m - 1) // m * m


def _pick_row_tile(n, target):
    """Largest multiple-of-8 divisor of n that is <= target, else n itself."""
    if n % 8 == 0:
        t = min(target, n)
        t -= t % 8
        while t >= 8:
            if n % t == 0:
                return t
            t -= 8
    return n


# ---------------------------------------------------------------------------
# Phase 1: per-metapath projection score, accumulated over node-row tiles.
#   grid = (M, N // T_N); out block (1, 8, 128) revisited across the i axis.
# ---------------------------------------------------------------------------
def _score_kernel(z_ref, w1_ref, b1_ref, w2_ref, o_ref):
    i = pl.program_id(1)

    @pl.when(i == 0)
    def _():
        o_ref[...] = jnp.zeros_like(o_ref)

    zb = z_ref[0]                                           # (T_N, Dp) f32
    # bf16 MXU matmul, f32 accumulation; tanh stays in f32 (EUP).
    t = jnp.tanh(
        jnp.dot(zb.astype(jnp.bfloat16), w1_ref[...],
                preferred_element_type=jnp.float32) + b1_ref[...])
    s = jnp.dot(t.astype(jnp.bfloat16), w2_ref[...],
                preferred_element_type=jnp.float32)         # (T_N, 128); only
    # column 0 is real (w2 is zero-padded), so the full-sum equals the score.
    o_ref[...] = o_ref[...] + jnp.sum(s)


# ---------------------------------------------------------------------------
# Phase 2: beta-weighted sum over metapaths, tiled over node rows.
#   grid = (N // T_N, M); metapath axis is the reduction into the out block.
# ---------------------------------------------------------------------------
def _weighted_sum_kernel(beta_ref, z_ref, o_ref):
    m = pl.program_id(1)
    contrib = beta_ref[m] * z_ref[0]                        # scalar * (T_N, Dp)

    @pl.when(m == 0)
    def _():
        o_ref[...] = contrib

    @pl.when(m > 0)
    def _():
        o_ref[...] = o_ref[...] + contrib


def semantic_attention(z, W1, b1, w2, *, row_tile=512):
    """SemanticAttention forward.

    z  : (N, M, D) float32  (same layout as the torch module's input)
    W1 : (D, H)  == torch project[0].weight.T
    b1 : (H,)    == torch project[0].bias
    w2 : (H,)    == torch project[2].weight[0]
    returns (N, D) float32
    """
    N, M, D = z.shape
    H = W1.shape[1]

    Dp = _round_up(D, 128)
    Hp = _round_up(H, 128)
    T_N = _pick_row_tile(N, row_tile)
    NT = N // T_N

    # (M, N, Dp) layout: nodes -> sublanes, features -> lanes (lane-dense).
    zt = jnp.transpose(z, (1, 0, 2))
    if Dp != D:
        zt = jnp.pad(zt, ((0, 0), (0, 0), (0, Dp - D)))

    # Pad projection params to lane-dense 128-multiples (exactly equivalent:
    # the padded hidden units have zero in- and out-weights).
    W1p = jnp.zeros((Dp, Hp), jnp.float32).at[:D, :H].set(W1).astype(jnp.bfloat16)
    b1p = jnp.zeros((1, Hp), jnp.float32).at[0, :H].set(b1)
    w2p = jnp.zeros((Hp, 128), jnp.float32).at[:H, 0].set(w2).astype(jnp.bfloat16)

    cparams = pltpu.CompilerParams(
        dimension_semantics=("parallel", "arbitrary"),
        vmem_limit_bytes=48 * 1024 * 1024)

    # ---- Phase 1: per-metapath scores -------------------------------------
    sums = pl.pallas_call(
        _score_kernel,
        grid=(M, NT),
        in_specs=[
            pl.BlockSpec((1, T_N, Dp), lambda m, i: (m, i, 0)),
            pl.BlockSpec((Dp, Hp), lambda m, i: (0, 0)),
            pl.BlockSpec((1, Hp), lambda m, i: (0, 0)),
            pl.BlockSpec((Hp, 128), lambda m, i: (0, 0)),
        ],
        out_specs=pl.BlockSpec((1, 8, 128), lambda m, i: (m, 0, 0)),
        out_shape=jax.ShapeDtypeStruct((M, 8, 128), jnp.float32),
        compiler_params=cparams,
    )(zt, W1p, b1p, w2p)

    w = sums[:, 0, 0] / N                   # mean over nodes -> (M,)
    beta = jax.nn.softmax(w)                # softmax over metapaths (tiny, XLA)

    # ---- Phase 2: beta-weighted sum over metapaths ------------------------
    out = pl.pallas_call(
        _weighted_sum_kernel,
        grid=(NT, M),
        in_specs=[
            pl.BlockSpec(memory_space=pltpu.MemorySpace.SMEM),      # beta (M,)
            pl.BlockSpec((1, T_N, Dp), lambda i, m: (m, i, 0)),
        ],
        out_specs=pl.BlockSpec((T_N, Dp), lambda i, m: (i, 0)),
        out_shape=jax.ShapeDtypeStruct((N, Dp), jnp.float32),
        compiler_params=cparams,
    )(beta, zt)

    if Dp != D:
        out = out[:, :D]
    return out


def semantic_attention_ref(z, W1, b1, w2):
    """Pure-JAX reference, mirrors the torch module exactly (f32)."""
    w = jnp.mean(jnp.tanh(z @ W1 + b1) @ w2[:, None], axis=0)   # (M, 1)
    beta = jax.nn.softmax(w, axis=0)                            # (M, 1)
    return jnp.sum(beta[None, :, :] * z, axis=1)                # (N, D)


if __name__ == "__main__":
    # Small deterministic setup: N nodes, M metapaths, D = in_size, H = hidden.
    N, M, D, H = 256, 3, 128, 64

    key = jax.random.PRNGKey(0)
    kz, k1, kb, k2 = jax.random.split(key, 4)
    z = jax.random.normal(kz, (N, M, D), jnp.float32)
    W1 = 0.1 * jax.random.normal(k1, (D, H), jnp.float32)
    b1 = 0.1 * jax.random.normal(kb, (H,), jnp.float32)
    w2 = 0.1 * jax.random.normal(k2, (H,), jnp.float32)

    fn = jax.jit(lambda a, b, c, d: semantic_attention(a, b, c, d, row_tile=64))
    out = jax.block_until_ready(fn(z, W1, b1, w2))

    assert out.shape == (N, D) and out.dtype == jnp.float32
    assert bool(jnp.all(jnp.isfinite(out)))

    ref = semantic_attention_ref(z, W1, b1, w2)
    err = float(jnp.max(jnp.abs(out - ref)))
    assert err < 5e-2, f"max abs error vs reference: {err}"

    print("KERNEL_OK")
</pallas_src>

<mosaic_0001>
module attributes {stable_mosaic.version = 11 : i64} {
  func.func @_score_kernel(%arg0: i32, %arg1: i32, %arg2: memref<1x64x128xf32, #tpu.memory_space<vmem>>, %arg3: memref<128x128xbf16, #tpu.memory_space<vmem>>, %arg4: memref<1x128xf32, #tpu.memory_space<vmem>>, %arg5: memref<128x128xbf16, #tpu.memory_space<vmem>>, %arg6: memref<1x8x128xf32, #tpu.memory_space<vmem>>) attributes {dimension_semantics = [#tpu.dimension_semantics<parallel>, #tpu.dimension_semantics<arbitrary>], iteration_bounds = array<i64: 3, 4>, scalar_prefetch = 0 : i64, scratch_operands = 0 : i64, tpu.core_type = #tpu.core_type<tc>, window_params = [{transform_indices = @transform_0, window_bounds = array<i64: 1, 64, 128>}, {pipeline_mode = #tpu.pipeline_mode<synchronous>, transform_indices = @transform_1, window_bounds = array<i64: 128, 128>}, {pipeline_mode = #tpu.pipeline_mode<synchronous>, transform_indices = @transform_2, window_bounds = array<i64: 1, 128>}, {pipeline_mode = #tpu.pipeline_mode<synchronous>, transform_indices = @transform_3, window_bounds = array<i64: 128, 128>}, {transform_indices = @transform_4, window_bounds = array<i64: 1, 8, 128>}]} {
    %c0_i32 = arith.constant 0 : i32
    %0 = arith.cmpi eq, %arg1, %c0_i32 : i32
    %1 = arith.extui %0 : i1 to i32
    %c0_i32_0 = arith.constant 0 : i32
    %2 = arith.cmpi ne, %1, %c0_i32_0 : i32
    scf.if %2 {
      %cst_17 = arith.constant 0.000000e+00 : f32
      %23 = vector.broadcast %cst_17 : f32 to vector<1x8x128xf32>
      %c0_18 = arith.constant 0 : index
      %c0_19 = arith.constant 0 : index
      %c0_20 = arith.constant 0 : index
      %24 = vector.load %arg6[%c0_18, %c0_19, %c0_20] : memref<1x8x128xf32, #tpu.memory_space<vmem>>, vector<1x8x128xf32>
      tpu.vector_store %arg6[%c0_18, %c0_19, %c0_20], %23 {strides = array<i32>} : memref<1x8x128xf32, #tpu.memory_space<vmem>>, vector<1x8x128xf32>,
    } else {
    }
    %c0 = arith.constant 0 : index
    %c0_1 = arith.constant 0 : index
    %c0_2 = arith.constant 0 : index
    %3 = vector.load %arg2[%c0, %c0_1, %c0_2] : memref<1x64x128xf32, #tpu.memory_space<vmem>>, vector<1x64x128xf32>
    %4 = vector.shape_cast %3 : vector<1x64x128xf32> to vector<64x128xf32>
    %5 = arith.truncf %4 : vector<64x128xf32> to vector<64x128xbf16>
    %c0_3 = arith.constant 0 : index
    %c0_4 = arith.constant 0 : index
    %6 = vector.load %arg3[%c0_3, %c0_4] : memref<128x128xbf16, #tpu.memory_space<vmem>>, vector<128x128xbf16>
    %cst = arith.constant dense<0.000000e+00> : vector<64x128xf32>
    %7 = tpu.matmul %5, %6, %cst {dimension_numbers = #tpu.dot_dimension_numbers<[1], [0], [0], [1], [0, 0, 1, 1], [], []>} : vector<64x128xbf16>, vector<128x128xbf16>, vector<64x128xf32> -> vector<64x128xf32>
    %c0_5 = arith.constant 0 : index
    %c0_6 = arith.constant 0 : index
    %8 = vector.load %arg4[%c0_5, %c0_6] : memref<1x128xf32, #tpu.memory_space<vmem>>, vector<1x128xf32>
    %9 = vector.broadcast %8 : vector<1x128xf32> to vector<64x128xf32>
    %10 = arith.addf %7, %9 : vector<64x128xf32>
    %11 = math.tanh %10 : vector<64x128xf32>
    %12 = arith.truncf %11 : vector<64x128xf32> to vector<64x128xbf16>
    %c0_7 = arith.constant 0 : index
    %c0_8 = arith.constant 0 : index
    %13 = vector.load %arg5[%c0_7, %c0_8] : memref<128x128xbf16, #tpu.memory_space<vmem>>, vector<128x128xbf16>
    %cst_9 = arith.constant dense<0.000000e+00> : vector<64x128xf32>
    %14 = tpu.matmul %12, %13, %cst_9 {dimension_numbers = #tpu.dot_dimension_numbers<[1], [0], [0], [1], [0, 0, 1, 1], [], []>} : vector<64x128xbf16>, vector<128x128xbf16>, vector<64x128xf32> -> vector<64x128xf32>
    %c0_10 = arith.constant 0 : index
    %c0_11 = arith.constant 0 : index
    %c0_12 = arith.constant 0 : index
    %15 = vector.load %arg6[%c0_10, %c0_11, %c0_12] : memref<1x8x128xf32, #tpu.memory_space<vmem>>, vector<1x8x128xf32>
    %16 = vector.shape_cast %14 : vector<64x128xf32> to vector<1x64x128xf32>
    %cst_13 = arith.constant dense<0.000000e+00> : vector<1xf32>
    %17 = vector.multi_reduction <add>, %16, %cst_13 [1, 2] : vector<1x64x128xf32> to vector<1xf32>
    %18 = vector.shape_cast %17 : vector<1xf32> to vector<1x1x1xf32>
    %19 = vector.extract %18[0, 0, 0] : f32 from vector<1x1x1xf32>
    %20 = vector.broadcast %19 : f32 to vector<1x8x128xf32>
    %21 = arith.addf %15, %20 : vector<1x8x128xf32>
    %c0_14 = arith.constant 0 : index
    %c0_15 = arith.constant 0 : index
    %c0_16 = arith.constant 0 : index
    %22 = vector.load %arg6[%c0_14, %c0_15, %c0_16] : memref<1x8x128xf32, #tpu.memory_space<vmem>>, vector<1x8x128xf32>
    tpu.vector_store %arg6[%c0_14, %c0_15, %c0_16], %21 {strides = array<i32>} : memref<1x8x128xf32, #tpu.memory_space<vmem>>, vector<1x8x128xf32>,
    return
  }
  func.func @transform_0(%arg0: i32, %arg1: i32) -> (i32, i32, i32) {
    %c0_i32 = arith.constant 0 : i32
    %c0_i32_0 = arith.constant 0 : i32
    return %arg0, %arg1, %c0_i32 : i32, i32, i32
  }
  func.func @transform_1(%arg0: i32, %arg1: i32) -> (i32, i32) {
    %c0_i32 = arith.constant 0 : i32
    %c0_i32_0 = arith.constant 0 : i32
    %c0_i32_1 = arith.constant 0 : i32
    return %c0_i32, %c0_i32_0 : i32, i32
  }
  func.func @transform_2(%arg0: i32, %arg1: i32) -> (i32, i32) {
    %c0_i32 = arith.constant 0 : i32
    %c0_i32_0 = arith.constant 0 : i32
    %c0_i32_1 = arith.constant 0 : i32
    return %c0_i32, %c0_i32_0 : i32, i32
  }
  func.func @transform_3(%arg0: i32, %arg1: i32) -> (i32, i32) {
    %c0_i32 = arith.constant 0 : i32
    %c0_i32_0 = arith.constant 0 : i32
    %c0_i32_1 = arith.constant 0 : i32
    return %c0_i32, %c0_i32_0 : i32, i32
  }
  func.func @transform_4(%arg0: i32, %arg1: i32) -> (i32, i32, i32) {
    %c0_i32 = arith.constant 0 : i32
    %c0_i32_0 = arith.constant 0 : i32
    %c0_i32_1 = arith.constant 0 : i32
    return %arg0, %c0_i32, %c0_i32_0 : i32, i32, i32
  }
}

module attributes {stable_mosaic.version = 11 : i64} {
  func.func @_weighted_sum_kernel(%arg0: i32, %arg1: i32, %arg2: memref<3xf32, #tpu.memory_space<smem>>, %arg3: memref<1x64x128xf32, #tpu.memory_space<vmem>>, %arg4: memref<64x128xf32, #tpu.memory_space<vmem>>) attributes {dimension_semantics = [#tpu.dimension_semantics<parallel>, #tpu.dimension_semantics<arbitrary>], iteration_bounds = array<i64: 4, 3>, scalar_prefetch = 0 : i64, scratch_operands = 0 : i64, tpu.core_type = #tpu.core_type<tc>, window_params = [{transform_indices = @transform_0, window_bounds = array<i64: 3>}, {transform_indices = @transform_1, window_bounds = array<i64: 1, 64, 128>}, {transform_indices = @transform_2, window_bounds = array<i64: 64, 128>}]} {
    %0 = arith.index_cast %arg1 : i32 to index
    %1 = memref.load %arg2[%0] : memref<3xf32, #tpu.memory_space<smem>>
    %c0 = arith.constant 0 : index
    %c0_0 = arith.constant 0 : index
    %c0_1 = arith.constant 0 : index
    %2 = vector.load %arg3[%c0, %c0_0, %c0_1] : memref<1x64x128xf32, #tpu.memory_space<vmem>>, vector<1x64x128xf32>
    %3 = vector.shape_cast %2 : vector<1x64x128xf32> to vector<64x128xf32>
    %4 = vector.broadcast %1 : f32 to vector<64x128xf32>
    %5 = arith.mulf %4, %3 : vector<64x128xf32>
    %c0_i32 = arith.constant 0 : i32
    %6 = arith.cmpi eq, %arg1, %c0_i32 : i32
    %7 = arith.extui %6 : i1 to i32
    %c0_i32_2 = arith.constant 0 : i32
    %8 = arith.cmpi ne, %7, %c0_i32_2 : i32
    scf.if %8 {
      %c0_5 = arith.constant 0 : index
      %c0_6 = arith.constant 0 : index
      %12 = vector.load %arg4[%c0_5, %c0_6] : memref<64x128xf32, #tpu.memory_space<vmem>>, vector<64x128xf32>
      tpu.vector_store %arg4[%c0_5, %c0_6], %5 {strides = array<i32>} : memref<64x128xf32, #tpu.memory_space<vmem>>, vector<64x128xf32>,
    } else {
    }
    %c0_i32_3 = arith.constant 0 : i32
    %9 = arith.cmpi sgt, %arg1, %c0_i32_3 : i32
    %10 = arith.extui %9 : i1 to i32
    %c0_i32_4 = arith.constant 0 : i32
    %11 = arith.cmpi ne, %10, %c0_i32_4 : i32
    scf.if %11 {
      %c0_5 = arith.constant 0 : index
      %c0_6 = arith.constant 0 : index
      %12 = vector.load %arg4[%c0_5, %c0_6] : memref<64x128xf32, #tpu.memory_space<vmem>>, vector<64x128xf32>
      %13 = arith.addf %12, %5 : vector<64x128xf32>
      %c0_7 = arith.constant 0 : index
      %c0_8 = arith.constant 0 : index
      %14 = vector.load %arg4[%c0_7, %c0_8] : memref<64x128xf32, #tpu.memory_space<vmem>>, vector<64x128xf32>
      tpu.vector_store %arg4[%c0_7, %c0_8], %13 {strides = array<i32>} : memref<64x128xf32, #tpu.memory_space<vmem>>, vector<64x128xf32>,
    } else {
    }
    return
  }
  func.func @transform_0(%arg0: i32, %arg1: i32) -> i32 {
    %c0_i32 = arith.constant 0 : i32
    %c0_i32_0 = arith.constant 0 : i32
    return %c0_i32 : i32
  }
  func.func @transform_1(%arg0: i32, %arg1: i32) -> (i32, i32, i32) {
    %c0_i32 = arith.constant 0 : i32
    %c0_i32_0 = arith.constant 0 : i32
    return %arg1, %arg0, %c0_i32 : i32, i32, i32
  }
  func.func @transform_2(%arg0: i32, %arg1: i32) -> (i32, i32) {
    %c0_i32 = arith.constant 0 : i32
    %c0_i32_0 = arith.constant 0 : i32
    return %arg0, %c0_i32 : i32, i32
  }
}

</mosaic_0001>

<llo_original>
// kernel: _lambda_.3
$region0: #{_lambda_.3}
  #allocation0 [shape = 'u32[]', space=smem, size = 0x4, offset = 0x4, fixed_abs, tag = 'smem constant byte address 0x4 - core index']
  #allocation1 [shape = 'u32[72,128]{1,0:T(1,128)}', space=vmem, size = 0x9000, scoped, tag = 'internal scratch']
  %s0 = inlined_call_operand.vmem [shape: f32[3], index: 0, kind: input, shape index: {}]
  %s1 = inlined_call_operand.hbm [shape: f32[3,256,128], index: 1, kind: input, shape index: {}]
  %s2 = inlined_call_operand.hbm [shape: f32[256,128], index: 2, kind: output, shape index: {}]
  %s3 = sld [smem:[#allocation0]]
  $region57: #{_lambda_.3} parent=0
    _
  %s5 = ssub.s32 1, %s3
  %s6 = scalar_select 0, %s5, %s3
  $region1: #{_lambda_.3} parent=0
    #allocation2 [shape = 'u8[512]{0}', space=smem, size = 0x200, scoped, tag = 'input window, operand 0, single buffered']
    #allocation3 [shape = 's32[2]{0}', space=sflag, size = 0x8, scoped, tag = 'scoped memory for _lambda_.3']
    #allocation4 [shape = 's32[2]{0}', space=sflag, size = 0x8, scoped, tag = 'scoped memory for _lambda_.3']
    #allocation5 [shape = 's32[2]{0}', space=sflag, size = 0x8, scoped, tag = 'scoped memory for _lambda_.3']
    #allocation6 [shape = 'u8[65536]{0}', space=vmem, size = 0x10000, scoped, tag = 'input window, operand 1']
    #allocation7 [shape = 'u8[65536]{0}', space=vmem, size = 0x10000, scoped, tag = 'output window, operand 0']
    %7 = vsyncpa [#allocation5], 0
    %8 = vsyncpa [#allocation3], 0
    %s9 = scalar_lea.sflag [#allocation3], 1
    %10 = vsyncpa %s9, 0
    %11 = vsyncpa [#allocation4], 0
    %s12 = scalar_lea.sflag [#allocation4], 1
    %13 = vsyncpa %s12, 0
    loop: start=0, step=1, limit=14
    $region2: #{_lambda_.3} parent=1 // loop_pre_header
      _
    $region3: #{_lambda_.3} parent=1 // loop_header
      %s15 = sphi 0, %s19
      %p16 = scmp.ge.s32.totalorder %s15, 14
      %s22 = sphi 0, %s34
      %s23 = sphi 0, %s30
      %s24 = sphi 0, %s22
      %s25 = sphi 0, %s23
      %s26 = sphi 0, %s24
      %s27 = sphi 0, %s25
      %s35 = sphi 0, %s35
      %s37 = sphi 0, %s35
      %s38 = sphi 0, %s37
      %s52 = sphi 0, %s38
      %s60 = sphi 0, %s62
      %s63 = sphi 0, %s60
      %s64 = sphi 0, %s63
      %s80 = sphi 0, %s64
      %s86 = sphi 0, %s88
      %s89 = sphi 0, %s86
      %s90 = sphi 0, %s89
      %s106 = sphi 0, %s90
    $region4: #{_lambda_.3} parent=1 // loop_header_branch
      %18 = sbr.rel (%p16) target = $region8
    $region5: #{_lambda_.3} parent=1 // loop_body
      %s20 = ssub.s32 %s15, 1
      %s21 = ssub.s32 %s15, 2
      %s28 = sadd.s32 1, %s23
      %p29 = scmp.ge.s32.totalorder %s28, 3
      %s30 = scalar_select %p29, 0, %s28
      %s31 = sadd.s32 1, %s22
      %s32 = scalar_select %p29, %s31, %s22
      %p33 = scmp.ge.s32.totalorder %s32, 4
      %s34 = scalar_select %p33, 0, %s32
      %s36 = sadd.s32 %s35, 1
      %p39 = scmp.eq.s32.totalorder %s15, 11
      %p40 = scmp.ne.s32.totalorder %s35, %s37
      %p41 = scmp.eq.s32.totalorder %s15, 0
      %p42 = por %p40, %p41
      %p43 = scmp.ne.s32.totalorder %s35, %s37
      %p44 = scmp.eq.s32.totalorder %s20, 11
      %p45 = por %p43, %p44
      %p46 = scmp.ne.s32.totalorder %s37, %s38
      %p47 = scmp.eq.s32.totalorder %s20, 0
      %p48 = por %p46, %p47
      %p49 = scmp.ne.s32.totalorder %s37, %s38
      %p50 = scmp.eq.s32.totalorder %s21, 11
      %p51 = por %p49, %p50
      %p53 = scmp.ne.s32.totalorder %s38, %s52
      %p54 = scmp.eq.s32.totalorder %s21, 0
      %p55 = por %p53, %p54
      %s56 = ssub.s32 %s23, %s30
      %s57 = ssub.s32 %s22, %s34
      %s58 = sor.u32 %s56, %s57
      %p59 = scmp.eq.s32.totalorder %s58, 0
      %s61 = sadd.s32 %s60, 1
      %s62 = scalar_select %p59, %s60, %s61
      %p65 = pneg %p59
      %p66 = scmp.eq.s32.totalorder %s15, 11
      %p67 = por %p65, %p66
      %p68 = scmp.ne.s32.totalorder %s60, %s63
      %p69 = scmp.eq.s32.totalorder %s15, 0
      %p70 = por %p68, %p69
      %p71 = scmp.ne.s32.totalorder %s60, %s63
      %p72 = scmp.eq.s32.totalorder %s20, 11
      %p73 = por %p71, %p72
      %p74 = scmp.ne.s32.totalorder %s63, %s64
      %p75 = scmp.eq.s32.totalorder %s20, 0
      %p76 = por %p74, %p75
      %p77 = scmp.ne.s32.totalorder %s63, %s64
      %p78 = scmp.eq.s32.totalorder %s21, 11
      %p79 = por %p77, %p78
      %p81 = scmp.ne.s32.totalorder %s64, %s80
      %p82 = scmp.eq.s32.totalorder %s21, 0
      %p83 = por %p81, %p82
      %s84 = ssub.s32 %s22, %s34
      %p85 = scmp.eq.s32.totalorder %s84, 0
      %s87 = sadd.s32 %s86, 1
      %s88 = scalar_select %p85, %s86, %s87
      %p91 = pneg %p85
      %p92 = scmp.eq.s32.totalorder %s15, 11
      %p93 = por %p91, %p92
      %p94 = scmp.ne.s32.totalorder %s86, %s89
      %p95 = scmp.eq.s32.totalorder %s15, 0
      %p96 = por %p94, %p95
      %p97 = scmp.ne.s32.totalorder %s86, %s89
      %p98 = scmp.eq.s32.totalorder %s20, 11
      %p99 = por %p97, %p98
      %p100 = scmp.ne.s32.totalorder %s89, %s90
      %p101 = scmp.eq.s32.totalorder %s20, 0
      %p102 = por %p100, %p101
      %p103 = scmp.ne.s32.totalorder %s89, %s90
      %p104 = scmp.eq.s32.totalorder %s21, 11
      %p105 = por %p103, %p104
      %p107 = scmp.ne.s32.totalorder %s90, %s106
      %p108 = scmp.eq.s32.totalorder %s21, 0
      %p109 = por %p107, %p108
      %p110 = scmp.le.s32.totalorder 1, %s15
      %p111 = scmp.lt.s32.totalorder %s15, 13
      %p112 = pnand %p110, %p111
      %p113 = pneg %p112
      // Predicated region
      $region9: #{_lambda_.3} parent=5 // pred_check
        _
      $region10: #{_lambda_.3} parent=5 // pred_check_branch
        %115 = sbr.rel (%p112) target = $region12
      $region11: #{_lambda_.3} parent=5 // pred_region
        %s116 = ssub.s32 %s15, 1
        // Predicated region
        $region13: #{_lambda_.3} parent=11 // pred_check
          %p117 = pneg %p48
        $region14: #{_lambda_.3} parent=11 // pred_check_branch
          %119 = sbr.rel (%p117) target = $region16
        $region15: #{_lambda_.3} parent=11 // pred_region
          %121 = vsyncadd [#allocation5], 0
          %s123 = sshll.u32 %s0, 4
          %s124 = int_to_ptr.vmem [resolvable:$true] %s123
          %126 = dma.vmem_to_smem %s124, 16, [#allocation2], [#allocation5]
        $region16: #{_lambda_.3} parent=11 // pred_fallthru
          _
      $region12: #{_lambda_.3} parent=5 // pred_fallthru
        _
      %p127 = scmp.lt.s32.totalorder %s15, 12
      // Predicated region
      $region17: #{_lambda_.3} parent=5 // pred_check
        %p128 = pneg %p127
      $region18: #{_lambda_.3} parent=5 // pred_check_branch
        %130 = sbr.rel (%p128) target = $region20
      $region19: #{_lambda_.3} parent=5 // pred_region
        // Predicated region
        $region21: #{_lambda_.3} parent=19 // pred_check
          %p131 = pneg %p70
        $region22: #{_lambda_.3} parent=19 // pred_check_branch
          %133 = sbr.rel (%p131) target = $region24
        $region23: #{_lambda_.3} parent=19 // pred_region
          %s134 = sand.u32 %s60, 1
          %s135 = scalar_lea.sflag [#allocation3], %s134
          %s136 = sand.u32 %s60, 1
          %s137 = smul.addr %s136, 64
          %s138 = scalar_lea.vmem [#allocation6], %s137
          %s139 = smul.u32 8, %s22
          %141 = vsyncadd %s135, 0
          %s142 = smul.addr %s23, 32
          %s143 = sadd.s32 %s139, %s142
          %s144 = smul.addr %s143, 8
          %s145 = scalar_lea.hbm %s1, %s144
          %s146 = sshll.u32 %s145, 4
          %s147 = int_to_ptr.hbm [resolvable:$true] %s146
          %s148 = sshll.u32 %s138, 4
          %s149 = int_to_ptr.vmem [resolvable:$true] %s148
          %154 = dma.hbm_to_vmem [thread:$0]  %s147, 1024, %s149, %s135, 128, 128, 8
        $region24: #{_lambda_.3} parent=19 // pred_fallthru
          _
      $region20: #{_lambda_.3} parent=5 // pred_fallthru
        _
      %p155 = scmp.le.s32.totalorder 1, %s15
      %p156 = scmp.lt.s32.totalorder %s15, 13
      %p157 = pnand %p155, %p156
      %p158 = pneg %p157
      // Predicated region
      $region25: #{_lambda_.3} parent=5 // pred_check
        _
      $region26: #{_lambda_.3} parent=5 // pred_check_branch
        %160 = sbr.rel (%p157) target = $region28
      $region27: #{_lambda_.3} parent=5 // pred_region
        %s161 = ssub.s32 %s15, 1
        // Predicated region
        $region29: #{_lambda_.3} parent=27 // pred_check
          %p162 = pneg %p48
        $region30: #{_lambda_.3} parent=27 // pred_check_branch
          %164 = sbr.rel (%p162) target = $region32
        $region31: #{_lambda_.3} parent=27 // pred_region
          %166 = dma.done [#allocation5], 16
        $region32: #{_lambda_.3} parent=27 // pred_fallthru
          _
        %s167 = sand.u32 %s63, 1
        %s168 = scalar_lea.sflag [#allocation3], %s167
        %s169 = sand.u32 %s63, 1
        %s170 = smul.addr %s169, 64
        %s171 = scalar_lea.vmem [#allocation6], %s170
        // Predicated region
        $region33: #{_lambda_.3} parent=27 // pred_check
          %p172 = pneg %p76
        $region34: #{_lambda_.3} parent=27 // pred_check_branch
          %174 = sbr.rel (%p172) target = $region36
        $region35: #{_lambda_.3} parent=27 // pred_region
          %176 = dma.done %s168, 1024
        $region36: #{_lambda_.3} parent=27 // pred_fallthru
          _
        %177 = sfence
        %p178 = pneg %p48
        %p179 = pneg %p45
        %s180 = sand.u32 %s63, 1
        %s181 = scalar_lea.sflag [#allocation3], %s180
        %s182 = sand.u32 %s63, 1
        %s183 = smul.addr %s182, 64
        %s184 = scalar_lea.vmem [#allocation6], %s183
        %p185 = pneg %p76
        %p186 = pneg %p73
        %p187 = pneg %p102
        %p188 = pneg %p99
        %s189 = sand.u32 %s89, 1
        %s190 = scalar_lea.sflag [#allocation4], %s189
        %s191 = sand.u32 %s89, 1
        %s192 = smul.addr %s191, 64
        %s193 = scalar_lea.vmem [#allocation7], %s192
        %s194 = smul.u32 8, %s24
        %s195 = smul.u32 8, %s24
        %s196 = sld [smem:[#allocation2 + %s25]]
        %v197 = vld [vmem:[%s171] sm:$0xff]
        %v198 = vld [vmem:[%s171 + $0x8] sm:$0xff]
        %v199 = vld [vmem:[%s171 + $0x10] sm:$0xff]
        %v200 = vld [vmem:[%s171 + $0x18] sm:$0xff]
        %v201 = vld [vmem:[%s171 + $0x20] sm:$0xff]
        %v202 = vld [vmem:[%s171 + $0x28] sm:$0xff]
        %v203 = vld [vmem:[%s171 + $0x30] sm:$0xff]
        %v204 = vld [vmem:[%s171 + $0x38] sm:$0xff]
        %v205 = vstv %s196
        %v206 = vmul.f32 %v205, %v197
        %v207 = vmul.f32 %v205, %v198
        %v208 = vmul.f32 %v205, %v199
        %v209 = vmul.f32 %v205, %v200
        %v210 = vmul.f32 %v205, %v201
        %v211 = vmul.f32 %v205, %v202
        %v212 = vmul.f32 %v205, %v203
        %v213 = vmul.f32 %v205, %v204
        %p214 = scmp.eq.s32.totalorder %s25, 0
        // Predicated region
        $region37: #{_lambda_.3} parent=27 // pred_check
          %p215 = pneg %p214
        $region38: #{_lambda_.3} parent=27 // pred_check_branch
          %217 = sbr.rel (%p215) target = $region40
        $region39: #{_lambda_.3} parent=27 // pred_region
          %218 = vst [vmem:[%s193] sm:$0xff] %v206
          %219 = vst [vmem:[%s193 + $0x8] sm:$0xff] %v207
          %220 = vst [vmem:[%s193 + $0x10] sm:$0xff] %v208
          %221 = vst [vmem:[%s193 + $0x18] sm:$0xff] %v209
          %222 = vst [vmem:[%s193 + $0x20] sm:$0xff] %v210
          %223 = vst [vmem:[%s193 + $0x28] sm:$0xff] %v211
          %224 = vst [vmem:[%s193 + $0x30] sm:$0xff] %v212
          %225 = vst [vmem:[%s193 + $0x38] sm:$0xff] %v213
        $region40: #{_lambda_.3} parent=27 // pred_fallthru
          _
        %p226 = scmp.gt.s32.totalorder %s25, 0
        // Predicated region
        $region41: #{_lambda_.3} parent=27 // pred_check
          %p227 = pneg %p226
        $region42: #{_lambda_.3} parent=27 // pred_check_branch
          %229 = sbr.rel (%p227) target = $region44
        $region43: #{_lambda_.3} parent=27 // pred_region
          %v230 = vld [vmem:[%s193] sm:$0xff]
          %v231 = vld [vmem:[%s193 + $0x8] sm:$0xff]
          %v232 = vld [vmem:[%s193 + $0x10] sm:$0xff]
          %v233 = vld [vmem:[%s193 + $0x18] sm:$0xff]
          %v234 = vld [vmem:[%s193 + $0x20] sm:$0xff]
          %v235 = vld [vmem:[%s193 + $0x28] sm:$0xff]
          %v236 = vld [vmem:[%s193 + $0x30] sm:$0xff]
          %v237 = vld [vmem:[%s193 + $0x38] sm:$0xff]
          %v238 = vadd.f32 %v230, %v206
          %v239 = vadd.f32 %v231, %v207
          %v240 = vadd.f32 %v232, %v208
          %v241 = vadd.f32 %v233, %v209
          %v242 = vadd.f32 %v234, %v210
          %v243 = vadd.f32 %v235, %v211
          %v244 = vadd.f32 %v236, %v212
          %v245 = vadd.f32 %v237, %v213
          %246 = vst [vmem:[%s193] sm:$0xff] %v238
          %247 = vst [vmem:[%s193 + $0x8] sm:$0xff] %v239
          %248 = vst [vmem:[%s193 + $0x10] sm:$0xff] %v240
          %249 = vst [vmem:[%s193 + $0x18] sm:$0xff] %v241
          %250 = vst [vmem:[%s193 + $0x20] sm:$0xff] %v242
          %251 = vst [vmem:[%s193 + $0x28] sm:$0xff] %v243
          %252 = vst [vmem:[%s193 + $0x30] sm:$0xff] %v244
          %253 = vst [vmem:[%s193 + $0x38] sm:$0xff] %v245
        $region44: #{_lambda_.3} parent=27 // pred_fallthru
          _
        %s254 = sand.u32 %s89, 1
        %s255 = scalar_lea.sflag [#allocation4], %s254
        %s256 = sand.u32 %s89, 1
        %s257 = smul.addr %s256, 64
        %s258 = scalar_lea.vmem [#allocation7], %s257
        // Predicated region
        $region45: #{_lambda_.3} parent=27 // pred_check
          %p259 = pneg %p99
        $region46: #{_lambda_.3} parent=27 // pred_check_branch
          %261 = sbr.rel (%p259) target = $region48
        $region47: #{_lambda_.3} parent=27 // pred_region
          %s262 = smul.u32 8, %s24
          %264 = vsyncadd %s255, 0
          %s265 = smul.addr %s262, 8
          %s266 = scalar_lea.hbm %s2, %s265
          %s267 = sshll.u32 %s258, 4
          %s268 = int_to_ptr.vmem [resolvable:$true] %s267
          %s269 = sshll.u32 %s266, 4
          %s270 = int_to_ptr.hbm [resolvable:$true] %s269
          %275 = dma.vmem_to_hbm [thread:$0]  %s268, 1024, %s270, %s255, 128, 128, 8
        $region48: #{_lambda_.3} parent=27 // pred_fallthru
          _
      $region28: #{_lambda_.3} parent=5 // pred_fallthru
        _
      %p276 = scmp.le.s32.totalorder 2, %s15
      // Predicated region
      $region49: #{_lambda_.3} parent=5 // pred_check
        %p277 = pneg %p276
      $region50: #{_lambda_.3} parent=5 // pred_check_branch
        %279 = sbr.rel (%p277) target = $region52
      $region51: #{_lambda_.3} parent=5 // pred_region
        %s280 = ssub.s32 %s15, 2
        // Predicated region
        $region53: #{_lambda_.3} parent=51 // pred_check
          %p281 = pneg %p105
        $region54: #{_lambda_.3} parent=51 // pred_check_branch
          %283 = sbr.rel (%p281) target = $region56
        $region55: #{_lambda_.3} parent=51 // pred_region
          %s284 = sand.u32 %s90, 1
          %s285 = scalar_lea.sflag [#allocation4], %s284
          %s286 = sand.u32 %s90, 1
          %s287 = smul.addr %s286, 64
          %s288 = scalar_lea.vmem [#allocation7], %s287
          %290 = dma.done %s285, 1024
        $region56: #{_lambda_.3} parent=51 // pred_fallthru
          _
      $region52: #{_lambda_.3} parent=5 // pred_fallthru
        _
    $region6: #{_lambda_.3} parent=1 // loop_footer
      %s19 = sadd.s32 1, %s15
    $region7: #{_lambda_.3} parent=1 // loop_footer_branch
      %14 = sbr.rel target = $region3
    $region8: #{_lambda_.3} parent=1 // loop_exit
      _
    %291 = vsyncpa [#allocation3], 1
    %s292 = scalar_lea.sflag [#allocation3], 1
    %293 = vsyncpa %s292, 1
    %294 = vsyncpa [#allocation4], 1
    %s295 = scalar_lea.sflag [#allocation4], 1
    %296 = vsyncpa %s295, 1
    %297 = vsyncpa [#allocation5], 1
    %s298 = scalar_lea.sflag [#allocation5], 1
    %299 = vsyncpa %s298, 1

// kernel: _lambda_.2
$region0: #{_lambda_.2}
  #allocation0 [shape = 'u32[]', space=smem, size = 0x4, offset = 0x4, fixed_abs, tag = 'smem constant byte address 0x4 - core index']
  #allocation1 [shape = 'u32[72,128]{1,0:T(1,128)}', space=vmem, size = 0x9000, scoped, tag = 'internal scratch']
  %s0 = inlined_call_operand.hbm [shape: f32[3,256,128], index: 0, kind: input, shape index: {}]
  %s1 = inlined_call_operand.vmem [shape: bf16[128,128], index: 1, kind: input, shape index: {}]
  %s2 = inlined_call_operand.vmem [shape: f32[1,128], index: 2, kind: input, shape index: {}]
  %s3 = inlined_call_operand.vmem [shape: bf16[128,128], index: 3, kind: input, shape index: {}]
  %s4 = inlined_call_operand.vmem [shape: f32[3,8,128], index: 4, kind: output, shape index: {}]
  %s5 = sld [smem:[#allocation0]]
  $region57: #{_lambda_.2} parent=0
    _
  %s7 = ssub.s32 1, %s5
  %s8 = scalar_select 0, %s7, %s5
  $region1: #{_lambda_.2} parent=0
    #allocation2 [shape = 'u8[65536]{0}', space=vmem, size = 0x10000, scoped, tag = 'input window, operand 0']
    #allocation3 [shape = 's32[2]{0}', space=sflag, size = 0x8, scoped, tag = 'scoped memory for _lambda_.2']
    %9 = vsyncpa [#allocation3], 0
    %s10 = scalar_lea.sflag [#allocation3], 1
    %11 = vsyncpa %s10, 0
    loop: start=0, step=1, limit=14
    $region2: #{_lambda_.2} parent=1 // loop_pre_header
      _
    $region3: #{_lambda_.2} parent=1 // loop_header
      %s13 = sphi 0, %s17
      %p14 = scmp.ge.s32.totalorder %s13, 14
      %s20 = sphi 0, %s32
      %s21 = sphi 0, %s28
      %s22 = sphi 0, %s20
      %s23 = sphi 0, %s21
      %s24 = sphi 0, %s22
      %s25 = sphi 0, %s23
      %s37 = sphi 0, %s39
      %s40 = sphi 0, %s37
      %s41 = sphi 0, %s40
      %s57 = sphi 0, %s41
      %s61 = sphi 0, %s61
      %s63 = sphi 0, %s61
      %s64 = sphi 0, %s63
      %s78 = sphi 0, %s64
      %s82 = sphi 0, %s82
      %s84 = sphi 0, %s82
      %s85 = sphi 0, %s84
      %s99 = sphi 0, %s85
      %s103 = sphi 0, %s103
      %s105 = sphi 0, %s103
      %s106 = sphi 0, %s105
      %s120 = sphi 0, %s106
      %s126 = sphi 0, %s128
      %s129 = sphi 0, %s126
      %s130 = sphi 0, %s129
      %s146 = sphi 0, %s130
    $region4: #{_lambda_.2} parent=1 // loop_header_branch
      %16 = sbr.rel (%p14) target = $region8
    $region5: #{_lambda_.2} parent=1 // loop_body
      %s18 = ssub.s32 %s13, 1
      %s19 = ssub.s32 %s13, 2
      %s26 = sadd.s32 1, %s21
      %p27 = scmp.ge.s32.totalorder %s26, 4
      %s28 = scalar_select %p27, 0, %s26
      %s29 = sadd.s32 1, %s20
      %s30 = scalar_select %p27, %s29, %s20
      %p31 = scmp.ge.s32.totalorder %s30, 3
      %s32 = scalar_select %p31, 0, %s30
      %s33 = ssub.s32 %s20, %s32
      %s34 = ssub.s32 %s21, %s28
      %s35 = sor.u32 %s33, %s34
      %p36 = scmp.eq.s32.totalorder %s35, 0
      %s38 = sadd.s32 %s37, 1
      %s39 = scalar_select %p36, %s37, %s38
      %p42 = pneg %p36
      %p43 = scmp.eq.s32.totalorder %s13, 11
      %p44 = por %p42, %p43
      %p45 = scmp.ne.s32.totalorder %s37, %s40
      %p46 = scmp.eq.s32.totalorder %s13, 0
      %p47 = por %p45, %p46
      %p48 = scmp.ne.s32.totalorder %s37, %s40
      %p49 = scmp.eq.s32.totalorder %s18, 11
      %p50 = por %p48, %p49
      %p51 = scmp.ne.s32.totalorder %s40, %s41
      %p52 = scmp.eq.s32.totalorder %s18, 0
      %p53 = por %p51, %p52
      %p54 = scmp.ne.s32.totalorder %s40, %s41
      %p55 = scmp.eq.s32.totalorder %s19, 11
      %p56 = por %p54, %p55
      %p58 = scmp.ne.s32.totalorder %s41, %s57
      %p59 = scmp.eq.s32.totalorder %s19, 0
      %p60 = por %p58, %p59
      %s62 = sadd.s32 %s61, 1
      %p65 = scmp.eq.s32.totalorder %s13, 11
      %p66 = scmp.ne.s32.totalorder %s61, %s63
      %p67 = scmp.eq.s32.totalorder %s13, 0
      %p68 = por %p66, %p67
      %p69 = scmp.ne.s32.totalorder %s61, %s63
      %p70 = scmp.eq.s32.totalorder %s18, 11
      %p71 = por %p69, %p70
      %p72 = scmp.ne.s32.totalorder %s63, %s64
      %p73 = scmp.eq.s32.totalorder %s18, 0
      %p74 = por %p72, %p73
      %p75 = scmp.ne.s32.totalorder %s63, %s64
      %p76 = scmp.eq.s32.totalorder %s19, 11
      %p77 = por %p75, %p76
      %p79 = scmp.ne.s32.totalorder %s64, %s78
      %p80 = scmp.eq.s32.totalorder %s19, 0
      %p81 = por %p79, %p80
      %s83 = sadd.s32 %s82, 1
      %p86 = scmp.eq.s32.totalorder %s13, 11
      %p87 = scmp.ne.s32.totalorder %s82, %s84
      %p88 = scmp.eq.s32.totalorder %s13, 0
      %p89 = por %p87, %p88
      %p90 = scmp.ne.s32.totalorder %s82, %s84
      %p91 = scmp.eq.s32.totalorder %s18, 11
      %p92 = por %p90, %p91
      %p93 = scmp.ne.s32.totalorder %s84, %s85
      %p94 = scmp.eq.s32.totalorder %s18, 0
      %p95 = por %p93, %p94
      %p96 = scmp.ne.s32.totalorder %s84, %s85
      %p97 = scmp.eq.s32.totalorder %s19, 11
      %p98 = por %p96, %p97
      %p100 = scmp.ne.s32.totalorder %s85, %s99
      %p101 = scmp.eq.s32.totalorder %s19, 0
      %p102 = por %p100, %p101
      %s104 = sadd.s32 %s103, 1
      %p107 = scmp.eq.s32.totalorder %s13, 11
      %p108 = scmp.ne.s32.totalorder %s103, %s105
      %p109 = scmp.eq.s32.totalorder %s13, 0
      %p110 = por %p108, %p109
      %p111 = scmp.ne.s32.totalorder %s103, %s105
      %p112 = scmp.eq.s32.totalorder %s18, 11
      %p113 = por %p111, %p112
      %p114 = scmp.ne.s32.totalorder %s105, %s106
      %p115 = scmp.eq.s32.totalorder %s18, 0
      %p116 = por %p114, %p115
      %p117 = scmp.ne.s32.totalorder %s105, %s106
      %p118 = scmp.eq.s32.totalorder %s19, 11
      %p119 = por %p117, %p118
      %p121 = scmp.ne.s32.totalorder %s106, %s120
      %p122 = scmp.eq.s32.totalorder %s19, 0
      %p123 = por %p121, %p122
      %s124 = ssub.s32 %s20, %s32
      %p125 = scmp.eq.s32.totalorder %s124, 0
      %s127 = sadd.s32 %s126, 1
      %s128 = scalar_select %p125, %s126, %s127
      %p131 = pneg %p125
      %p132 = scmp.eq.s32.totalorder %s13, 11
      %p133 = por %p131, %p132
      %p134 = scmp.ne.s32.totalorder %s126, %s129
      %p135 = scmp.eq.s32.totalorder %s13, 0
      %p136 = por %p134, %p135
      %p137 = scmp.ne.s32.totalorder %s126, %s129
      %p138 = scmp.eq.s32.totalorder %s18, 11
      %p139 = por %p137, %p138
      %p140 = scmp.ne.s32.totalorder %s129, %s130
      %p141 = scmp.eq.s32.totalorder %s18, 0
      %p142 = por %p140, %p141
      %p143 = scmp.ne.s32.totalorder %s129, %s130
      %p144 = scmp.eq.s32.totalorder %s19, 11
      %p145 = por %p143, %p144
      %p147 = scmp.ne.s32.totalorder %s130, %s146
      %p148 = scmp.eq.s32.totalorder %s19, 0
      %p149 = por %p147, %p148
      %p150 = scmp.le.s32.totalorder 1, %s13
      %p151 = scmp.lt.s32.totalorder %s13, 13
      %p152 = pnand %p150, %p151
      %p153 = pneg %p152
      // Predicated region
      $region9: #{_lambda_.2} parent=5 // pred_check
        _
      $region10: #{_lambda_.2} parent=5 // pred_check_branch
        %155 = sbr.rel (%p152) target = $region12
      $region11: #{_lambda_.2} parent=5 // pred_region
        %s156 = ssub.s32 %s13, 1
        // Predicated region
        $region13: #{_lambda_.2} parent=11 // pred_check
          %p157 = pneg %p74
        $region14: #{_lambda_.2} parent=11 // pred_check_branch
          %159 = sbr.rel (%p157) target = $region16
        $region15: #{_lambda_.2} parent=11 // pred_region
          _
        $region16: #{_lambda_.2} parent=11 // pred_fallthru
          _
        // Predicated region
        $region17: #{_lambda_.2} parent=11 // pred_check
          %p160 = pneg %p95
        $region18: #{_lambda_.2} parent=11 // pred_check_branch
          %162 = sbr.rel (%p160) target = $region20
        $region19: #{_lambda_.2} parent=11 // pred_region
          _
        $region20: #{_lambda_.2} parent=11 // pred_fallthru
          _
        // Predicated region
        $region21: #{_lambda_.2} parent=11 // pred_check
          %p163 = pneg %p116
        $region22: #{_lambda_.2} parent=11 // pred_check_branch
          %165 = sbr.rel (%p163) target = $region24
        $region23: #{_lambda_.2} parent=11 // pred_region
          _
        $region24: #{_lambda_.2} parent=11 // pred_fallthru
          _
      $region12: #{_lambda_.2} parent=5 // pred_fallthru
        _
      %p166 = scmp.lt.s32.totalorder %s13, 12
      // Predicated region
      $region25: #{_lambda_.2} parent=5 // pred_check
        %p167 = pneg %p166
      $region26: #{_lambda_.2} parent=5 // pred_check_branch
        %169 = sbr.rel (%p167) target = $region28
      $region27: #{_lambda_.2} parent=5 // pred_region
        // Predicated region
        $region29: #{_lambda_.2} parent=27 // pred_check
          %p170 = pneg %p47
        $region30: #{_lambda_.2} parent=27 // pred_check_branch
          %172 = sbr.rel (%p170) target = $region32
        $region31: #{_lambda_.2} parent=27 // pred_region
          %s173 = sand.u32 %s37, 1
          %s174 = scalar_lea.sflag [#allocation3], %s173
          %s175 = sand.u32 %s37, 1
          %s176 = smul.addr %s175, 64
          %s177 = scalar_lea.vmem [#allocation2], %s176
          %s178 = smul.u32 8, %s21
          %180 = vsyncadd %s174, 0
          %s181 = smul.addr %s20, 32
          %s182 = sadd.s32 %s178, %s181
          %s183 = smul.addr %s182, 8
          %s184 = scalar_lea.hbm %s0, %s183
          %s185 = sshll.u32 %s184, 4
          %s186 = int_to_ptr.hbm [resolvable:$true] %s185
          %s187 = sshll.u32 %s177, 4
          %s188 = int_to_ptr.vmem [resolvable:$true] %s187
          %193 = dma.hbm_to_vmem [thread:$0]  %s186, 1024, %s188, %s174, 128, 128, 8
        $region32: #{_lambda_.2} parent=27 // pred_fallthru
          _
      $region28: #{_lambda_.2} parent=5 // pred_fallthru
        _
      %p194 = scmp.le.s32.totalorder 1, %s13
      %p195 = scmp.lt.s32.totalorder %s13, 13
      %p196 = pnand %p194, %p195
      %p197 = pneg %p196
      // Predicated region
      $region33: #{_lambda_.2} parent=5 // pred_check
        _
      $region34: #{_lambda_.2} parent=5 // pred_check_branch
        %199 = sbr.rel (%p196) target = $region36
      $region35: #{_lambda_.2} parent=5 // pred_region
        %s200 = ssub.s32 %s13, 1
        %s201 = sand.u32 %s40, 1
        %s202 = scalar_lea.sflag [#allocation3], %s201
        %s203 = sand.u32 %s40, 1
        %s204 = smul.addr %s203, 64
        %s205 = scalar_lea.vmem [#allocation2], %s204
        // Predicated region
        $region37: #{_lambda_.2} parent=35 // pred_check
          %p206 = pneg %p53
        $region38: #{_lambda_.2} parent=35 // pred_check_branch
          %208 = sbr.rel (%p206) target = $region40
        $region39: #{_lambda_.2} parent=35 // pred_region
          %210 = dma.done %s202, 1024
        $region40: #{_lambda_.2} parent=35 // pred_fallthru
          _
        %s211 = sand.u32 %s40, 1
        %s212 = scalar_lea.sflag [#allocation3], %s211
        %s213 = sand.u32 %s40, 1
        %s214 = smul.addr %s213, 64
        %s215 = scalar_lea.vmem [#allocation2], %s214
        %p216 = pneg %p53
        %p217 = pneg %p50
        %p218 = pneg %p74
        %p219 = pneg %p71
        %p220 = pneg %p95
        %p221 = pneg %p92
        %p222 = pneg %p116
        %p223 = pneg %p113
        %p224 = pneg %p142
        %p225 = pneg %p139
        %p226 = scmp.lt.s32.totalorder %s22, 2
        %s227 = scalar_select %p226, %s22, 2
        %s228 = smul.addr %s227, 8
        %s229 = scalar_lea.vmem %s4, %s228
        %s230 = smul.u32 8, %s23
        %p231 = scmp.lt.s32.totalorder %s22, 2
        %s232 = scalar_select %p231, %s22, 2
        %s233 = smul.addr %s232, 8
        %s234 = scalar_lea.vmem %s4, %s233
        %p235 = scmp.eq.s32.totalorder %s23, 0
        // Predicated region
        $region41: #{_lambda_.2} parent=35 // pred_check
          %p236 = pneg %p235
        $region42: #{_lambda_.2} parent=35 // pred_check_branch
          %238 = sbr.rel (%p236) target = $region44
        $region43: #{_lambda_.2} parent=35 // pred_region
          %239 = vst [vmem:[%s234] sm:$0xff] 0.0
        $region44: #{_lambda_.2} parent=35 // pred_fallthru
          _
        %v240 = vld [vmem:[%s205] sm:$0xff]
        %v241 = vld [vmem:[%s205 + $0x8] sm:$0xff]
        %v242 = vld [vmem:[%s205 + $0x10] sm:$0xff]
        %v243 = vld [vmem:[%s205 + $0x18] sm:$0xff]
        %v244 = vld [vmem:[%s205 + $0x20] sm:$0xff]
        %v245 = vld [vmem:[%s205 + $0x28] sm:$0xff]
        %v246 = vld [vmem:[%s205 + $0x30] sm:$0xff]
        %v247 = vld [vmem:[%s205 + $0x38] sm:$0xff]
        %v248 = vpack.c.bf16 %v241, %v240
        %v249 = vpack.c.bf16 %v243, %v242
        %v250 = vpack.c.bf16 %v245, %v244
        %v251 = vpack.c.bf16 %v247, %v246
        %v252 = vld [vmem:[%s1] sm:$0xf]
        %v253 = vld [vmem:[%s1 + $0x4] sm:$0xf]
        %v254 = vld [vmem:[%s1 + $0x8] sm:$0xf]
        %v255 = vld [vmem:[%s1 + $0xc] sm:$0xf]
        %v256 = vld [vmem:[%s1 + $0x10] sm:$0xf]
        %v257 = vld [vmem:[%s1 + $0x14] sm:$0xf]
        %v258 = vld [vmem:[%s1 + $0x18] sm:$0xf]
        %v259 = vld [vmem:[%s1 + $0x1c] sm:$0xf]
        %v260 = vld [vmem:[%s1 + $0x20] sm:$0xf]
        %v261 = vld [vmem:[%s1 + $0x24] sm:$0xf]
        %v262 = vld [vmem:[%s1 + $0x28] sm:$0xf]
        %v263 = vld [vmem:[%s1 + $0x2c] sm:$0xf]
        %v264 = vld [vmem:[%s1 + $0x30] sm:$0xf]
        %v265 = vld [vmem:[%s1 + $0x34] sm:$0xf]
        %v266 = vld [vmem:[%s1 + $0x38] sm:$0xf]
        %v267 = vld [vmem:[%s1 + $0x3c] sm:$0xf]
        %v268 = vld [vmem:[%s2] sm:$0x1]
        %v270 = vperm.slane %v268, 0
        %v288 = vunpack.c.l.b16 %v252
        %v289 = vunpack.c.l.b16 %v253
        %v290 = vunpack.c.l.b16 %v254
        %v291 = vunpack.c.l.b16 %v255
        %v292 = vunpack.c.l.b16 %v256
        %v293 = vunpack.c.l.b16 %v257
        %v294 = vunpack.c.l.b16 %v258
        %v295 = vunpack.c.l.b16 %v259
        %v296 = vunpack.c.l.b16 %v260
        %v297 = vunpack.c.l.b16 %v261
        %v298 = vunpack.c.l.b16 %v262
        %v299 = vunpack.c.l.b16 %v263
        %v300 = vunpack.c.l.b16 %v264
        %v301 = vunpack.c.l.b16 %v265
        %v302 = vunpack.c.l.b16 %v266
        %v303 = vunpack.c.l.b16 %v267
        %v304 = vpack.c.b16 %v289, %v288
        %v305 = vpack.c.b16 %v291, %v290
        %v306 = vpack.c.b16 %v293, %v292
        %v307 = vpack.c.b16 %v295, %v294
        %v308 = vpack.c.b16 %v297, %v296
        %v309 = vpack.c.b16 %v299, %v298
        %v310 = vpack.c.b16 %v301, %v300
        %v311 = vpack.c.b16 %v303, %v302
        %320 = vmatpush.bf16.msra.mxu0 %v311
        %321 = vmatpush.bf16.msra.mxu0 %v310
        %322 = vmatpush.bf16.msra.mxu0 %v309
        %323 = vmatpush.bf16.msra.mxu0 %v308
        %324 = vmatpush.bf16.msra.mxu0 %v307
        %325 = vmatpush.bf16.msra.mxu0 %v306
        %326 = vmatpush.bf16.msra.mxu0 %v305
        %327 = vmatpush.bf16.msra.mxu0 %v304
        %328 = vmatmul.bf16.gmra.mxu0 %v248
        %v329 = vpop.f32.mrf.mxu0
        %v330 = vadd.f32 %v270, %v329
        %v331 = vpop.f32.mrf.mxu0
        %v332 = vadd.f32 %v270, %v331
        %333 = vmatmul.bf16.gmra.mxu0 %v249
        %v334 = vpop.f32.mrf.mxu0
        %v335 = vadd.f32 %v270, %v334
        %v336 = vpop.f32.mrf.mxu0
        %v337 = vadd.f32 %v270, %v336
        %338 = vmatmul.bf16.gmra.mxu0 %v250
        %v339 = vpop.f32.mrf.mxu0
        %v340 = vadd.f32 %v270, %v339
        %v341 = vpop.f32.mrf.mxu0
        %v342 = vadd.f32 %v270, %v341
        %343 = vmatmul.bf16.gmra.mxu0 %v251
        %v344 = vpop.f32.mrf.mxu0
        %v345 = vadd.f32 %v270, %v344
        %v346 = vpop.f32.mrf.mxu0
        %v347 = vadd.f32 %v270, %v346
        %348 = vdwg.mxu0
        %v349 = vtanh.pop %v330
        %v350 = vtanh.pop %v332
        %v351 = vtanh.pop %v335
        %v352 = vtanh.pop %v337
        %v353 = vtanh.pop %v340
        %v354 = vtanh.pop %v342
        %v355 = vtanh.pop %v345
        %v356 = vtanh.pop %v347
        %v357 = vpack.c.bf16 %v350, %v349
        %v358 = vpack.c.bf16 %v352, %v351
        %v359 = vpack.c.bf16 %v354, %v353
        %v360 = vpack.c.bf16 %v356, %v355
        %v361 = vld [vmem:[%s3] sm:$0xf]
        %v362 = vld [vmem:[%s3 + $0x4] sm:$0xf]
        %v363 = vld [vmem:[%s3 + $0x8] sm:$0xf]
        %v364 = vld [vmem:[%s3 + $0xc] sm:$0xf]
        %v365 = vld [vmem:[%s3 + $0x10] sm:$0xf]
        %v366 = vld [vmem:[%s3 + $0x14] sm:$0xf]
        %v367 = vld [vmem:[%s3 + $0x18] sm:$0xf]
        %v368 = vld [vmem:[%s3 + $0x1c] sm:$0xf]
        %v369 = vld [vmem:[%s3 + $0x20] sm:$0xf]
        %v370 = vld [vmem:[%s3 + $0x24] sm:$0xf]
        %v371 = vld [vmem:[%s3 + $0x28] sm:$0xf]
        %v372 = vld [vmem:[%s3 + $0x2c] sm:$0xf]
        %v373 = vld [vmem:[%s3 + $0x30] sm:$0xf]
        %v374 = vld [vmem:[%s3 + $0x34] sm:$0xf]
        %v375 = vld [vmem:[%s3 + $0x38] sm:$0xf]
        %v376 = vld [vmem:[%s3 + $0x3c] sm:$0xf]
        %v393 = vunpack.c.l.b16 %v361
        %v394 = vunpack.c.l.b16 %v362
        %v395 = vunpack.c.l.b16 %v363
        %v396 = vunpack.c.l.b16 %v364
        %v397 = vunpack.c.l.b16 %v365
        %v398 = vunpack.c.l.b16 %v366
        %v399 = vunpack.c.l.b16 %v367
        %v400 = vunpack.c.l.b16 %v368
        %v401 = vunpack.c.l.b16 %v369
        %v402 = vunpack.c.l.b16 %v370
        %v403 = vunpack.c.l.b16 %v371
        %v404 = vunpack.c.l.b16 %v372
        %v405 = vunpack.c.l.b16 %v373
        %v406 = vunpack.c.l.b16 %v374
        %v407 = vunpack.c.l.b16 %v375
        %v408 = vunpack.c.l.b16 %v376
        %v409 = vpack.c.b16 %v394, %v393
        %v410 = vpack.c.b16 %v396, %v395
        %v411 = vpack.c.b16 %v398, %v397
        %v412 = vpack.c.b16 %v400, %v399
        %v413 = vpack.c.b16 %v402, %v401
        %v414 = vpack.c.b16 %v404, %v403
        %v415 = vpack.c.b16 %v406, %v405
        %v416 = vpack.c.b16 %v408, %v407
        %425 = vmatpush.bf16.msra.mxu0 %v416
        %426 = vmatpush.bf16.msra.mxu0 %v415
        %427 = vmatpush.bf16.msra.mxu0 %v414
        %428 = vmatpush.bf16.msra.mxu0 %v413
        %429 = vmatpush.bf16.msra.mxu0 %v412
        %430 = vmatpush.bf16.msra.mxu0 %v411
        %431 = vmatpush.bf16.msra.mxu0 %v410
        %432 = vmatpush.bf16.msra.mxu0 %v409
        %433 = vmatmul.bf16.gmra.mxu0 %v357
        %v434 = vpop.f32.mrf.mxu0
        %v435 = vadd.f32 0.0, %v434
        %v436 = vpop.f32.mrf.mxu0
        %v437 = vadd.f32 0.0, %v436
        %438 = vmatmul.bf16.gmra.mxu0 %v358
        %v439 = vpop.f32.mrf.mxu0
        %v440 = vadd.f32 0.0, %v439
        %v441 = vpop.f32.mrf.mxu0
        %v442 = vadd.f32 0.0, %v441
        %443 = vmatmul.bf16.gmra.mxu0 %v359
        %v444 = vpop.f32.mrf.mxu0
        %v445 = vadd.f32 0.0, %v444
        %v446 = vpop.f32.mrf.mxu0
        %v447 = vadd.f32 0.0, %v446
        %448 = vmatmul.bf16.gmra.mxu0 %v360
        %v449 = vpop.f32.mrf.mxu0
        %v450 = vadd.f32 0.0, %v449
        %v451 = vpop.f32.mrf.mxu0
        %v452 = vadd.f32 0.0, %v451
        %453 = vdwg.mxu0
        %v454 = vld [vmem:[%s234] sm:$0xff]
        %v455 = vadd.f32 %v435, %v437
        %v456 = vadd.f32 %v455, %v440
        %v457 = vadd.f32 %v456, %v442
        %v458 = vadd.f32 %v457, %v445
        %v459 = vadd.f32 %v458, %v447
        %v460 = vadd.f32 %v459, %v450
        %v461 = vadd.f32 %v460, %v452
        %462 = vadd.xlane.f32.xlu0 %v461
        %v463 = vpop.xlane.xlu0 %462
        %v464 = vrot.slane %v463, 4
        %v465 = vadd.f32 %v463, %v464
        %v466 = vrot.slane %v465, 2
        %v467 = vadd.f32 %v465, %v466
        %v468 = vrot.slane %v467, 1
        %v469 = vadd.f32 %v467, %v468
        %s470 = vtos %v469
        %v471 = vstv %s470
        %v472 = vadd.f32 %v454, %v471
        %473 = vst [vmem:[%s234] sm:$0xff] %v472
        %p474 = scmp.lt.s32.totalorder %s22, 2
        %s475 = scalar_select %p474, %s22, 2
        %s476 = smul.addr %s475, 8
        %s477 = scalar_lea.vmem %s4, %s476
        // Predicated region
        $region45: #{_lambda_.2} parent=35 // pred_check
          %p478 = pneg %p139
        $region46: #{_lambda_.2} parent=35 // pred_check_branch
          %480 = sbr.rel (%p478) target = $region48
        $region47: #{_lambda_.2} parent=35 // pred_region
          _
        $region48: #{_lambda_.2} parent=35 // pred_fallthru
          _
      $region36: #{_lambda_.2} parent=5 // pred_fallthru
        _
      %p481 = scmp.le.s32.totalorder 2, %s13
      // Predicated region
      $region49: #{_lambda_.2} parent=5 // pred_check
        %p482 = pneg %p481
      $region50: #{_lambda_.2} parent=5 // pred_check_branch
        %484 = sbr.rel (%p482) target = $region52
      $region51: #{_lambda_.2} parent=5 // pred_region
        %s485 = ssub.s32 %s13, 2
        // Predicated region
        $region53: #{_lambda_.2} parent=51 // pred_check
          %p486 = pneg %p145
        $region54: #{_lambda_.2} parent=51 // pred_check_branch
          %488 = sbr.rel (%p486) target = $region56
        $region55: #{_lambda_.2} parent=51 // pred_region
          %p489 = scmp.lt.s32.totalorder %s24, 2
          %s490 = scalar_select %p489, %s24, 2
          %s491 = smul.addr %s490, 8
          %s492 = scalar_lea.vmem %s4, %s491
        $region56: #{_lambda_.2} parent=51 // pred_fallthru
          _
      $region52: #{_lambda_.2} parent=5 // pred_fallthru
        _
    $region6: #{_lambda_.2} parent=1 // loop_footer
      %s17 = sadd.s32 1, %s13
    $region7: #{_lambda_.2} parent=1 // loop_footer_branch
      %12 = sbr.rel target = $region3
    $region8: #{_lambda_.2} parent=1 // loop_exit
      _
    %493 = vsyncpa [#allocation3], 1
    %s494 = scalar_lea.sflag [#allocation3], 1
    %495 = vsyncpa %s494, 1

</llo_original>
